<compile_context>
chip_gen: v6e
topology: v6e:2x2x1
jax: 0.10.0
libtpu: 0.0.40
codegen_flags: <defaults>
</compile_context>

<pallas_src>
import math

import jax
import jax.numpy as jnp
from jax.experimental import pallas as pl
from jax.experimental.pallas import tpu as pltpu


def build_positional_encoding(d_model: int, max_seq_length: int) -> jnp.ndarray:
    """Deterministic sinusoidal positional encoding, shape (1, max_seq_length, d_model)."""
    position = jnp.arange(0, max_seq_length, dtype=jnp.float32)[:, None]            # (L, 1)
    div_term = jnp.exp(
        jnp.arange(0, d_model, 2, dtype=jnp.float32) * -(math.log(10000.0) / d_model)
    )                                                                                # (D/2,)
    angles = position * div_term                                                     # (L, D/2)
    pe = jnp.zeros((max_seq_length, d_model), dtype=jnp.float32)
    pe = pe.at[:, 0::2].set(jnp.sin(angles))
    pe = pe.at[:, 1::2].set(jnp.cos(angles))
    return pe[None, :, :]                                                            # (1, L, D)


def _add_pe_kernel(x_ref, pe_ref, o_ref):
    # Memory-bound elementwise add.  Refs are either 2D (batch dim squeezed)
    # or 3D with pe's leading dim == 1; jnp broadcasting covers both cases.
    o_ref[...] = x_ref[...] + pe_ref[...]


def _largest_divisor_leq(n: int, cap: int) -> int:
    cap = max(1, min(n, cap))
    for d in range(cap, 0, -1):
        if n % d == 0:
            return d
    return 1


def _pick_tile_rows(R: int, C: int, itemsize: int, sublane: int, target_bytes: int) -> int:
    """Row-tile: multiple of `sublane`, block footprint <= target_bytes, prefer divisors of R."""
    if R * C * itemsize <= target_bytes or R < sublane:
        return R
    max_rows = (target_bytes // (C * itemsize)) // sublane * sublane
    max_rows = max(sublane, min(max_rows, (R // sublane) * sublane))
    cand = max_rows
    while cand >= sublane:
        if R % cand == 0:
            return cand
        cand -= sublane
    return max_rows  # non-divisible grid; Pallas masks the last partial block


def positional_encoding_forward(x: jnp.ndarray, pe: jnp.ndarray,
                                *, target_block_bytes: int = 2 * 1024 * 1024) -> jnp.ndarray:
    """x: (B, S, D); pe: (1, max_seq_length, D).  Returns x + pe[:, :S]."""
    B, S, D = x.shape
    # Static buffer slice (== self.pe[:, :x.size(1)]) and dtype match -- wrapper glue.
    pe_s = pe[:, :S, :].astype(x.dtype)

    itemsize = x.dtype.itemsize
    sublane = max(8, 32 // itemsize)  # 8 (f32) / 16 (bf16) / 32 (int8)

    # ---- normalize to a lane-dense (B, R, C) view --------------------------
    if D % 128 == 0:
        R, C = S, D
        xr, per = x, pe_s
    elif (S * D) % 128 == 0:
        C = 128
        for width in (1024, 512, 256):
            if (S * D) % width == 0:
                C = width
                break
        R = (S * D) // C
        xr = x.reshape(B, R, C)       # minor-dim flatten: layout-preserving, no copy
        per = pe_s.reshape(1, R, C)
    else:
        # Ragged trailing dims: fall back to one full (S, D) slab per batch row.
        # Correct, but uses masked partial stores when D % 128 != 0.
        R, C = S, D
        xr, per = x, pe_s

    # ---- choose tiles (~target_block_bytes per block) -----------------------
    per_batch_bytes = R * C * itemsize
    if B == 1 or per_batch_bytes >= target_block_bytes // 4:
        b_tile = 1
        tile_r = _pick_tile_rows(R, C, itemsize, sublane, target_block_bytes)
    else:
        # Tiny per-batch slabs: fuse batch rows so each grid step moves enough bytes.
        tile_r = R
        cap = max(1, target_block_bytes // per_batch_bytes)
        if B > 2:
            cap = min(cap, B // 2)  # keep >= 2 batch tiles for megacore sharding
        b_tile = _largest_divisor_leq(B, cap)

    num_r = pl.cdiv(R, tile_r)
    num_b = pl.cdiv(B, b_tile)

    # Batch is the inner grid axis; pe's block index is constant along it, so the
    # pe tile stays VMEM-resident (no re-DMA) across consecutive batch steps.
    if b_tile == 1:
        x_block = (None, tile_r, C)   # leading dim squeezed -> kernel sees (tile_r, C)
        pe_block = (None, tile_r, C)
    else:
        x_block = (b_tile, tile_r, C)
        pe_block = (1, tile_r, C)     # broadcast over fused batch rows in-kernel

    out = pl.pallas_call(
        _add_pe_kernel,
        out_shape=jax.ShapeDtypeStruct((B, R, C), x.dtype),
        grid_spec=pltpu.PrefetchScalarGridSpec(
            num_scalar_prefetch=0,
            grid=(num_r, num_b),
            in_specs=[
                pl.BlockSpec(x_block, lambda s, b: (b, s, 0)),   # x tile
                pl.BlockSpec(pe_block, lambda s, b: (0, s, 0)),  # pe tile (batch-invariant)
            ],
            out_specs=pl.BlockSpec(x_block, lambda s, b: (b, s, 0)),
        ),
        compiler_params=pltpu.CompilerParams(
            dimension_semantics=("parallel", "parallel"),
        ),
    )(xr, per)

    return out.reshape(B, S, D)


if __name__ == "__main__":
    key = jax.random.PRNGKey(0)

    def check(B, S, D, max_len, dtype=jnp.float32, **kw):
        k = jax.random.fold_in(key, B * 10000 + S * 100 + D)
        x = jax.random.normal(k, (B, S, D), dtype=jnp.float32).astype(dtype)
        pe = build_positional_encoding(d_model=D, max_seq_length=max_len)
        out = jax.block_until_ready(positional_encoding_forward(x, pe, **kw))
        ref = x + pe[:, :S].astype(x.dtype)
        assert out.shape == (B, S, D)
        tol = 1e-6 if dtype == jnp.float32 else 1e-2
        assert jnp.allclose(out, ref, atol=tol, rtol=tol), (B, S, D, dtype)

    # Primary small demo shape consistent with the module: (batch=2, seq=8, d_model=32).
    check(2, 8, 32, 16)
    # Lane-dense d_model path (D % 128 == 0) with batch-row fusion.
    check(2, 16, 128, 32)
    # Single-batch path exercising the sequence-tiling grid axis (tiny forced target).
    check(1, 32, 128, 32, target_block_bytes=4096)
    # Ragged fallback path (S*D not a multiple of 128) -- masked stores, still correct.
    check(2, 7, 20, 16)
    # bf16 path (sublane packing = 16).
    check(2, 16, 128, 32, dtype=jnp.bfloat16)

    print("KERNEL_OK")
</pallas_src>

<mosaic_0001>
module attributes {stable_mosaic.version = 11 : i64} {
  func.func @_add_pe_kernel(%arg0: i32, %arg1: i32, %arg2: memref<2x1x256xf32, #tpu.memory_space<vmem>>, %arg3: memref<1x1x256xf32, #tpu.memory_space<vmem>>, %arg4: memref<2x1x256xf32, #tpu.memory_space<vmem>>) attributes {dimension_semantics = [#tpu.dimension_semantics<parallel>, #tpu.dimension_semantics<parallel>], iteration_bounds = array<i64: 1, 1>, scalar_prefetch = 0 : i64, scratch_operands = 0 : i64, tpu.core_type = #tpu.core_type<tc>, window_params = [{transform_indices = @transform_0, window_bounds = array<i64: 2, 1, 256>}, {transform_indices = @transform_1, window_bounds = array<i64: 1, 1, 256>}, {transform_indices = @transform_2, window_bounds = array<i64: 2, 1, 256>}]} {
    %c0 = arith.constant 0 : index
    %c0_0 = arith.constant 0 : index
    %c0_1 = arith.constant 0 : index
    %0 = vector.load %arg2[%c0, %c0_0, %c0_1] : memref<2x1x256xf32, #tpu.memory_space<vmem>>, vector<2x1x256xf32>
    %c0_2 = arith.constant 0 : index
    %c0_3 = arith.constant 0 : index
    %c0_4 = arith.constant 0 : index
    %1 = vector.load %arg3[%c0_2, %c0_3, %c0_4] : memref<1x1x256xf32, #tpu.memory_space<vmem>>, vector<1x1x256xf32>
    %2 = vector.broadcast %1 : vector<1x1x256xf32> to vector<2x1x256xf32>
    %3 = arith.addf %0, %2 : vector<2x1x256xf32>
    %c0_5 = arith.constant 0 : index
    %c0_6 = arith.constant 0 : index
    %c0_7 = arith.constant 0 : index
    %4 = vector.load %arg4[%c0_5, %c0_6, %c0_7] : memref<2x1x256xf32, #tpu.memory_space<vmem>>, vector<2x1x256xf32>
    tpu.vector_store %arg4[%c0_5, %c0_6, %c0_7], %3 {strides = array<i32>} : memref<2x1x256xf32, #tpu.memory_space<vmem>>, vector<2x1x256xf32>,
    return
  }
  func.func @transform_0(%arg0: i32, %arg1: i32) -> (i32, i32, i32) {
    %c0_i32 = arith.constant 0 : i32
    %c0_i32_0 = arith.constant 0 : i32
    return %arg1, %arg0, %c0_i32 : i32, i32, i32
  }
  func.func @transform_1(%arg0: i32, %arg1: i32) -> (i32, i32, i32) {
    %c0_i32 = arith.constant 0 : i32
    %c0_i32_0 = arith.constant 0 : i32
    %c0_i32_1 = arith.constant 0 : i32
    return %c0_i32, %arg0, %c0_i32_0 : i32, i32, i32
  }
  func.func @transform_2(%arg0: i32, %arg1: i32) -> (i32, i32, i32) {
    %c0_i32 = arith.constant 0 : i32
    %c0_i32_0 = arith.constant 0 : i32
    return %arg1, %arg0, %c0_i32 : i32, i32, i32
  }
}

</mosaic_0001>

<llo_original>
// kernel: tpu_custom_call.1
$region0: #{tpu_custom_call.1}
  #allocation0 [shape = 'u32[]', space=smem, size = 0x4, offset = 0x4, fixed_abs, tag = 'smem constant byte address 0x4 - core index']
  #allocation1 [shape = 'u32[144,128]{1,0:T(1,128)}', space=vmem, size = 0x12000, scoped, tag = 'internal scratch']
  %s0 = inlined_call_operand.hbm [shape: f32[2,1,256], index: 0, kind: input, shape index: {}]
  %s1 = inlined_call_operand.hbm [shape: f32[1,1,256], index: 1, kind: input, shape index: {}]
  %s2 = inlined_call_operand.hbm [shape: f32[2,1,256], index: 2, kind: output, shape index: {}]
  %s3 = sld [smem:[#allocation0]]
  $region26: #{tpu_custom_call.1} parent=0
    _
  %s5 = ssub.s32 1, %s3
  %s6 = scalar_select 0, %s5, %s3
  $region1: #{tpu_custom_call.1} parent=0
    #allocation2 [shape = 'u8[2048]{0}', space=vmem, size = 0x800, scoped, tag = 'input window, operand 0, single buffered']
    #allocation3 [shape = 's32[1]{0}', space=sflag, size = 0x4, scoped, tag = 'scoped memory for tpu_custom_call.1']
    #allocation4 [shape = 's32[1]{0}', space=sflag, size = 0x4, scoped, tag = 'scoped memory for tpu_custom_call.1']
    #allocation5 [shape = 'u8[1024]{0}', space=vmem, size = 0x400, scoped, tag = 'input window, operand 1, single buffered']
    #allocation6 [shape = 's32[1]{0}', space=sflag, size = 0x4, scoped, tag = 'scoped memory for tpu_custom_call.1']
    #allocation7 [shape = 'u8[2048]{0}', space=vmem, size = 0x800, scoped, tag = 'output window, operand 0, single buffered']
    %7 = vsyncpa [#allocation3], 0
    %8 = vsyncpa [#allocation6], 0
    %9 = vsyncpa [#allocation4], 0
    // Predicated region
    $region2: #{tpu_custom_call.1} parent=1 // pred_check
      _
    $region3: #{tpu_custom_call.1} parent=1 // pred_check_branch
      %11 = sbr.rel (0) target = $region5
    $region4: #{tpu_custom_call.1} parent=1 // pred_region
      %s13 = ssub.s32 64, 64
      %14 = vsyncadd [#allocation3], %s13
      %s15 = sshll.u32 [#allocation2], 4
      %s16 = int_to_ptr.vmem [resolvable:$true] %s15
      %21 = dma.hbm_to_vmem [thread:$0]  %s0, 64, %s16, [#allocation3], 32, 32, 2
    $region5: #{tpu_custom_call.1} parent=1 // pred_fallthru
      _
    // Predicated region
    $region6: #{tpu_custom_call.1} parent=1 // pred_check
      _
    $region7: #{tpu_custom_call.1} parent=1 // pred_check_branch
      %23 = sbr.rel (0) target = $region9
    $region8: #{tpu_custom_call.1} parent=1 // pred_region
      %s25 = ssub.s32 32, 32
      %26 = vsyncadd [#allocation6], %s25
      %s28 = sshll.u32 [#allocation5], 4
      %s29 = int_to_ptr.vmem [resolvable:$true] %s28
      %31 = dma.hbm_to_vmem [thread:$0]  %s1, 32, %s29, [#allocation6]
    $region9: #{tpu_custom_call.1} parent=1 // pred_fallthru
      _
    // Predicated region
    $region10: #{tpu_custom_call.1} parent=1 // pred_check
      _
    $region11: #{tpu_custom_call.1} parent=1 // pred_check_branch
      %33 = sbr.rel (0) target = $region13
    $region12: #{tpu_custom_call.1} parent=1 // pred_region
      %34 = dma.done [#allocation3], 64
    $region13: #{tpu_custom_call.1} parent=1 // pred_fallthru
      _
    // Predicated region
    $region14: #{tpu_custom_call.1} parent=1 // pred_check
      _
    $region15: #{tpu_custom_call.1} parent=1 // pred_check_branch
      %36 = sbr.rel (0) target = $region17
    $region16: #{tpu_custom_call.1} parent=1 // pred_region
      %37 = dma.done [#allocation6], 32
    $region17: #{tpu_custom_call.1} parent=1 // pred_fallthru
      _
    %v38 = vld [vmem:[#allocation2] sm:$0x3]
    %v39 = vld [vmem:[#allocation2 + $0x2] sm:$0x3]
    %v40 = vld [vmem:[#allocation5] sm:$0x3]
    %v41 = vadd.f32 %v38, %v40
    %v42 = vadd.f32 %v39, %v40
    %v43 = vlaneseq
    %vm44 = vcmp.ge.s32.totalorder %v43, 0
    %vm45 = vcmp.lt.s32.totalorder %v43, 256
    %vm46 = vmand %vm44, %vm45
    %47 = vst.msk [vmem:[#allocation7] sm:$0x3] %vm46, %v41
    %48 = vst.msk [vmem:[#allocation7 + $0x2] sm:$0x3] %vm46, %v42
    // Predicated region
    $region18: #{tpu_custom_call.1} parent=1 // pred_check
      _
    $region19: #{tpu_custom_call.1} parent=1 // pred_check_branch
      %50 = sbr.rel (0) target = $region21
    $region20: #{tpu_custom_call.1} parent=1 // pred_region
      %s52 = ssub.s32 64, 64
      %53 = vsyncadd [#allocation4], %s52
      %s54 = sshll.u32 [#allocation7], 4
      %s55 = int_to_ptr.vmem [resolvable:$true] %s54
      %60 = dma.vmem_to_hbm [thread:$0]  %s55, 64, %s2, [#allocation4], 32, 32, 2
    $region21: #{tpu_custom_call.1} parent=1 // pred_fallthru
      _
    // Predicated region
    $region22: #{tpu_custom_call.1} parent=1 // pred_check
      _
    $region23: #{tpu_custom_call.1} parent=1 // pred_check_branch
      %62 = sbr.rel (0) target = $region25
    $region24: #{tpu_custom_call.1} parent=1 // pred_region
      %63 = dma.done [#allocation4], 64
    $region25: #{tpu_custom_call.1} parent=1 // pred_fallthru
      _
    %64 = vsyncpa [#allocation3], 1
    %65 = vsyncpa [#allocation6], 1
    %66 = vsyncpa [#allocation4], 1

</llo_original>
